<compile_context>
chip_gen: v5e
topology: v5e:2x2
jax: 0.10.0
libtpu: 0.0.40
codegen_flags: <defaults>
</compile_context>

<pallas_src>
import functools

import jax
import jax.numpy as jnp
from jax.experimental import pallas as pl
from jax.experimental.pallas import tpu as pltpu

_MiB = 1024 * 1024


def _round_up(x, m):
    return ((x + m - 1) // m) * m


def _vmem_capacity_bytes():
    try:
        return int(pltpu.get_tpu_info().vmem_capacity_bytes)
    except Exception:
        return 64 * _MiB  # conservative (v7x-sized) fallback


def _hconv_kernel(x_ref, w_ref, b_ref, o_ref, *, rw, out_w):
    # x_ref: (TR, out_w + rw - 1, Cin)  compute dtype
    # w_ref: (rw, Cin, Cout_pad)        compute dtype
    # b_ref: (1, Cout_pad)              f32
    # o_ref: (TR * out_w, Cout_pad)     out dtype
    tr = x_ref.shape[0]
    cin = x_ref.shape[2]
    acc = None
    for t in range(rw):  # rw is tiny & static -> unrolled taps
        lhs = x_ref[:, t:t + out_w, :].reshape(tr * out_w, cin)
        contrib = jnp.dot(lhs, w_ref[t], preferred_element_type=jnp.float32)
        acc = contrib if acc is None else acc + contrib
    o_ref[...] = (acc + b_ref[...]).astype(o_ref.dtype)


def _pick_tr(rows, wp_k, w_pad, cin, cout_pad, rw, in_b, out_b,
             budget_bytes, tr_max, min_steps=4):
    """Largest multiple-of-8 row tile fitting the VMEM budget, with enough
    grid steps for pipeline overlap (>= 2 steps per v7x TensorCore)."""
    fixed = 2 * rw * cin * cout_pad * in_b + 2 * cout_pad * 4  # weights + bias
    per_row = (2 * wp_k * cin * in_b             # double-buffered input block
               + 2 * w_pad * cout_pad * out_b    # double-buffered output block
               + 2 * w_pad * cout_pad * 4)       # f32 SSA acc + dot transient
    avail = max(budget_bytes - fixed, 8 * per_row)
    tr = int(max(8, ((avail // per_row) // 8) * 8))
    tr = min(tr, tr_max)
    rows8 = _round_up(rows, 8)
    tr = min(tr, rows8)
    if rows8 >= 8 * min_steps:
        tr = min(tr, max(8, ((rows8 // min_steps) // 8) * 8))
    elif rows8 >= 16:
        tr = min(tr, max(8, ((rows8 // 2) // 8) * 8))
    return tr


def hconv_rows_forward(x_rows, weight, bias=None, *, capture_center=True,
                       compute_dtype=jnp.bfloat16, out_dtype=None,
                       vmem_limit_bytes=None):
    """HorizontalConv2d forward on channel-last rows.

    x_rows: (rows, W, Cin); weight: (Cout, Cin, 1, rw); bias: (Cout,) or None.
    Returns (rows, W, Cout).  Keep activations in this layout across a
    PixelCNN stack so the NCHW transposes in `hconv_forward` disappear.
    """
    rows, W, Cin = x_rows.shape
    Cout, Cin_w, kh, rw = weight.shape
    if kh != 1 or Cin_w != Cin:
        raise ValueError("weight must be (Cout, Cin, 1, rw) with matching Cin")
    if rw < 1:
        raise ValueError("kernel_size=1 with capture_center=False gives an "
                         "empty (zero-width) kernel")
    # TODO(synk): grouped convolution (groups > 1) is not implemented in-kernel.

    if compute_dtype is None:
        compute_dtype = x_rows.dtype
    if out_dtype is None:
        out_dtype = x_rows.dtype
    if bias is None:
        bias = jnp.zeros((Cout,), jnp.float32)

    # --- horizontal causal padding (matches F.pad(+crop) of the module) ------
    if capture_center:
        pad_left, x_src = rw - 1, x_rows
    else:
        pad_left, x_src = rw, x_rows[:, :W - 1, :]
    # Pad W to a packing multiple so the in-kernel (TR, W, Cin) -> (TR*W, Cin)
    # merge is a free view (no relayout copy) for f32 and bf16 alike.
    w_pad = _round_up(W, 16)
    wp_k = w_pad + rw - 1                       # kernel-visible input width
    pad_right = wp_k - pad_left - x_src.shape[1]
    x_k = jnp.pad(x_src, ((0, 0), (pad_left, pad_right), (0, 0)))
    x_k = x_k.astype(compute_dtype)

    # --- lane-dense output channels ------------------------------------------
    cout_pad = _round_up(Cout, 128)
    w_rcio = jnp.transpose(weight[:, :, 0, :], (2, 1, 0))       # (rw, Cin, Cout)
    w_k = jnp.pad(w_rcio, ((0, 0), (0, 0), (0, cout_pad - Cout)))
    w_k = w_k.astype(compute_dtype)
    b_k = jnp.pad(bias.astype(jnp.float32),
                  (0, cout_pad - Cout)).reshape(1, cout_pad)

    # --- generation-aware tiling / VMEM budgeting -----------------------------
    cap = _vmem_capacity_bytes()
    if vmem_limit_bytes is None:
        vmem_limit_bytes = max(32 * _MiB, min(cap, 128 * _MiB) - 16 * _MiB)
    budget = int(0.55 * vmem_limit_bytes)       # blocks + transients headroom
    tr_max = 1024 if cap >= 96 * _MiB else 512  # 128 MiB parts vs v7x (64 MiB)
    in_b = jnp.dtype(compute_dtype).itemsize
    out_b = jnp.dtype(out_dtype).itemsize
    TR = _pick_tr(rows, wp_k, w_pad, Cin, cout_pad, rw, in_b, out_b,
                  budget, tr_max)
    grid_n = pl.cdiv(rows, TR)
    rows_pad = grid_n * TR
    if rows_pad != rows:                        # pad tail rows (computed on zeros)
        x_k = jnp.pad(x_k, ((0, rows_pad - rows), (0, 0), (0, 0)))

    kernel = functools.partial(_hconv_kernel, rw=rw, out_w=w_pad)
    out = pl.pallas_call(
        kernel,
        out_shape=jax.ShapeDtypeStruct((rows_pad * w_pad, cout_pad), out_dtype),
        grid=(grid_n,),
        in_specs=[
            pl.BlockSpec((TR, wp_k, Cin), lambda i: (i, 0, 0)),
            pl.BlockSpec((rw, Cin, cout_pad), lambda i: (0, 0, 0)),
            pl.BlockSpec((1, cout_pad), lambda i: (0, 0)),
        ],
        out_specs=pl.BlockSpec((TR * w_pad, cout_pad), lambda i: (i, 0)),
        compiler_params=pltpu.CompilerParams(
            dimension_semantics=("parallel",),
            vmem_limit_bytes=int(vmem_limit_bytes)),
    )(x_k, w_k, b_k)

    return out.reshape(rows_pad, w_pad, cout_pad)[:rows, :W, :Cout]


def hconv_forward(x, weight, bias=None, **kwargs):
    """NCHW wrapper matching the PyTorch module API.

    x: (B, Cin, H, W); weight: (Cout, Cin, 1, rw); bias: (Cout,) or None.
    Returns (B, Cout, H, W).
    NOTE: the NCHW <-> (rows, W, C) transposes here are full HBM passes; in a
    PixelCNN stack call `hconv_rows_forward` directly with channel-last data.
    """
    B, Cin, H, W = x.shape
    Cout = weight.shape[0]
    x_rows = jnp.transpose(x, (0, 2, 3, 1)).reshape(B * H, W, Cin)
    y = hconv_rows_forward(x_rows, weight, bias, **kwargs)
    return jnp.transpose(y.reshape(B, H, W, Cout), (0, 3, 1, 2))


def reference_forward(x, weight, bias, *, capture_center=True):
    """Pure-JAX reference mirroring the PyTorch forward (NCHW)."""
    rw = weight.shape[-1]
    W = x.shape[-1]
    if capture_center:
        pad_left, pad_right = rw - 1, 0
    else:
        pad_left, pad_right = rw, -1
    xp = jnp.pad(x, ((0, 0), (0, 0), (0, 0), (pad_left, max(pad_right, 0))))
    if pad_right < 0:
        xp = xp[..., :pad_right]
    out = jnp.zeros((x.shape[0], weight.shape[0], x.shape[2], W), jnp.float32)
    for t in range(rw):
        out = out + jnp.einsum("bchw,oc->bohw",
                               xp[..., t:t + W], weight[:, :, 0, t])
    return out + bias[None, :, None, None]


if __name__ == "__main__":
    key = jax.random.PRNGKey(0)
    B, Cin, Cout, H, W = 2, 4, 8, 16, 16
    kernel_size = 5  # odd, as required by the module

    kx, kw, kb = jax.random.split(key, 3)
    x = jax.random.normal(kx, (B, Cin, H, W), dtype=jnp.float32)

    ok = True
    for capture_center in (True, False):
        rw = kernel_size // 2 + 1 if capture_center else kernel_size // 2
        fan_in = Cin * 1 * rw
        bound = 1.0 / float(fan_in) ** 0.5
        weight = jax.random.uniform(kw, (Cout, Cin, 1, rw), jnp.float32,
                                    minval=-bound, maxval=bound)
        bias = jax.random.uniform(kb, (Cout,), jnp.float32,
                                  minval=-bound, maxval=bound)

        y_ref = reference_forward(x, weight, bias,
                                  capture_center=capture_center)

        # f32 compute path: exact check.
        y = hconv_forward(x, weight, bias, capture_center=capture_center,
                          compute_dtype=jnp.float32)
        y = jax.block_until_ready(y)
        if y.shape != (B, Cout, H, W):
            ok = False
        elif not jnp.allclose(y, y_ref, atol=1e-5, rtol=1e-5):
            ok = False

        # bf16 compute path (default / fast), f32 and bf16 outputs.
        for od in (None, jnp.bfloat16):
            y = hconv_forward(x, weight, bias, capture_center=capture_center,
                              compute_dtype=jnp.bfloat16, out_dtype=od)
            y = jax.block_until_ready(y)
            if y.shape != (B, Cout, H, W):
                ok = False
            elif not jnp.allclose(y.astype(jnp.float32), y_ref,
                                  atol=5e-2, rtol=5e-2):
                ok = False

    if ok:
        print("KERNEL_OK")
</pallas_src>

<mosaic_0001>
module attributes {stable_mosaic.version = 11 : i64} {
  func.func @_hconv_kernel(%arg0: i32, %arg1: memref<8x18x4xf32, #tpu.memory_space<vmem>>, %arg2: memref<3x4x128xf32, #tpu.memory_space<vmem>>, %arg3: memref<1x128xf32, #tpu.memory_space<vmem>>, %arg4: memref<128x128xf32, #tpu.memory_space<vmem>>) attributes {dimension_semantics = [#tpu.dimension_semantics<parallel>], iteration_bounds = array<i64: 4>, scalar_prefetch = 0 : i64, scratch_operands = 0 : i64, tpu.core_type = #tpu.core_type<tc>, window_params = [{transform_indices = @transform_0, window_bounds = array<i64: 8, 18, 4>}, {pipeline_mode = #tpu.pipeline_mode<synchronous>, transform_indices = @transform_1, window_bounds = array<i64: 3, 4, 128>}, {pipeline_mode = #tpu.pipeline_mode<synchronous>, transform_indices = @transform_2, window_bounds = array<i64: 1, 128>}, {transform_indices = @transform_3, window_bounds = array<i64: 128, 128>}]} {
    %c0 = arith.constant 0 : index
    %c0_0 = arith.constant 0 : index
    %c0_1 = arith.constant 0 : index
    %0 = vector.load %arg1[%c0, %c0_0, %c0_1] : memref<8x18x4xf32, #tpu.memory_space<vmem>>, vector<8x16x4xf32>
    %1 = vector.shape_cast %0 : vector<8x16x4xf32> to vector<128x4xf32>
    %c0_2 = arith.constant 0 : index
    %c0_3 = arith.constant 0 : index
    %c0_4 = arith.constant 0 : index
    %2 = vector.load %arg2[%c0_2, %c0_3, %c0_4] : memref<3x4x128xf32, #tpu.memory_space<vmem>>, vector<1x4x128xf32>
    %3 = vector.shape_cast %2 : vector<1x4x128xf32> to vector<4x128xf32>
    %cst = arith.constant dense<0.000000e+00> : vector<128x128xf32>
    %4 = tpu.matmul %1, %3, %cst {dimension_numbers = #tpu.dot_dimension_numbers<[1], [0], [0], [1], [0, 0, 1, 1], [], []>} : vector<128x4xf32>, vector<4x128xf32>, vector<128x128xf32> -> vector<128x128xf32>
    %c0_5 = arith.constant 0 : index
    %c1 = arith.constant 1 : index
    %c0_6 = arith.constant 0 : index
    %5 = vector.load %arg1[%c0_5, %c1, %c0_6] : memref<8x18x4xf32, #tpu.memory_space<vmem>>, vector<8x16x4xf32>
    %6 = vector.shape_cast %5 : vector<8x16x4xf32> to vector<128x4xf32>
    %c1_7 = arith.constant 1 : index
    %c0_8 = arith.constant 0 : index
    %c0_9 = arith.constant 0 : index
    %7 = vector.load %arg2[%c1_7, %c0_8, %c0_9] : memref<3x4x128xf32, #tpu.memory_space<vmem>>, vector<1x4x128xf32>
    %8 = vector.shape_cast %7 : vector<1x4x128xf32> to vector<4x128xf32>
    %cst_10 = arith.constant dense<0.000000e+00> : vector<128x128xf32>
    %9 = tpu.matmul %6, %8, %cst_10 {dimension_numbers = #tpu.dot_dimension_numbers<[1], [0], [0], [1], [0, 0, 1, 1], [], []>} : vector<128x4xf32>, vector<4x128xf32>, vector<128x128xf32> -> vector<128x128xf32>
    %10 = arith.addf %4, %9 : vector<128x128xf32>
    %c0_11 = arith.constant 0 : index
    %c2 = arith.constant 2 : index
    %c0_12 = arith.constant 0 : index
    %11 = vector.load %arg1[%c0_11, %c2, %c0_12] : memref<8x18x4xf32, #tpu.memory_space<vmem>>, vector<8x16x4xf32>
    %12 = vector.shape_cast %11 : vector<8x16x4xf32> to vector<128x4xf32>
    %c2_13 = arith.constant 2 : index
    %c0_14 = arith.constant 0 : index
    %c0_15 = arith.constant 0 : index
    %13 = vector.load %arg2[%c2_13, %c0_14, %c0_15] : memref<3x4x128xf32, #tpu.memory_space<vmem>>, vector<1x4x128xf32>
    %14 = vector.shape_cast %13 : vector<1x4x128xf32> to vector<4x128xf32>
    %cst_16 = arith.constant dense<0.000000e+00> : vector<128x128xf32>
    %15 = tpu.matmul %12, %14, %cst_16 {dimension_numbers = #tpu.dot_dimension_numbers<[1], [0], [0], [1], [0, 0, 1, 1], [], []>} : vector<128x4xf32>, vector<4x128xf32>, vector<128x128xf32> -> vector<128x128xf32>
    %16 = arith.addf %10, %15 : vector<128x128xf32>
    %c0_17 = arith.constant 0 : index
    %c0_18 = arith.constant 0 : index
    %17 = vector.load %arg3[%c0_17, %c0_18] : memref<1x128xf32, #tpu.memory_space<vmem>>, vector<1x128xf32>
    %18 = vector.broadcast %17 : vector<1x128xf32> to vector<128x128xf32>
    %19 = arith.addf %16, %18 : vector<128x128xf32>
    %c0_19 = arith.constant 0 : index
    %c0_20 = arith.constant 0 : index
    %20 = vector.load %arg4[%c0_19, %c0_20] : memref<128x128xf32, #tpu.memory_space<vmem>>, vector<128x128xf32>
    tpu.vector_store %arg4[%c0_19, %c0_20], %19 {strides = array<i32>} : memref<128x128xf32, #tpu.memory_space<vmem>>, vector<128x128xf32>,
    return
  }
  func.func @transform_0(%arg0: i32) -> (i32, i32, i32) {
    %c0_i32 = arith.constant 0 : i32
    %c0_i32_0 = arith.constant 0 : i32
    %c0_i32_1 = arith.constant 0 : i32
    return %arg0, %c0_i32, %c0_i32_0 : i32, i32, i32
  }
  func.func @transform_1(%arg0: i32) -> (i32, i32, i32) {
    %c0_i32 = arith.constant 0 : i32
    %c0_i32_0 = arith.constant 0 : i32
    %c0_i32_1 = arith.constant 0 : i32
    %c0_i32_2 = arith.constant 0 : i32
    return %c0_i32, %c0_i32_0, %c0_i32_1 : i32, i32, i32
  }
  func.func @transform_2(%arg0: i32) -> (i32, i32) {
    %c0_i32 = arith.constant 0 : i32
    %c0_i32_0 = arith.constant 0 : i32
    %c0_i32_1 = arith.constant 0 : i32
    return %c0_i32, %c0_i32_0 : i32, i32
  }
  func.func @transform_3(%arg0: i32) -> (i32, i32) {
    %c0_i32 = arith.constant 0 : i32
    %c0_i32_0 = arith.constant 0 : i32
    return %arg0, %c0_i32 : i32, i32
  }
}

</mosaic_0001>

<llo_original>
// kernel: tpu_custom_call.1
$region0: #{tpu_custom_call.1}
  #allocation0 [shape = 'u32[]', space=smem, size = 0x4, offset = 0x4, fixed_abs, tag = 'smem constant byte address 0x4 - core index']
  #allocation1 [shape = 'u32[72,128]{1,0:T(1,128)}', space=vmem, size = 0x9000, scoped, tag = 'internal scratch']
  %s0 = inlined_call_operand.vmem [shape: f32[32,18,4], index: 0, kind: input, shape index: {}]
  %s1 = inlined_call_operand.vmem [shape: f32[3,4,128], index: 1, kind: input, shape index: {}]
  %s2 = inlined_call_operand.vmem [shape: f32[1,128], index: 2, kind: input, shape index: {}]
  %s3 = inlined_call_operand.hbm [shape: f32[512,128], index: 3, kind: output, shape index: {}]
  %s4 = sld [smem:[#allocation0]]
  $region45: #{tpu_custom_call.1} parent=0
    _
  %s6 = ssub.s32 1, %s4
  %s7 = scalar_select 0, %s6, %s4
  $region1: #{tpu_custom_call.1} parent=0
    #allocation2 [shape = 'u8[131072]{0}', space=vmem, size = 0x20000, scoped, tag = 'output window, operand 0']
    #allocation3 [shape = 's32[2]{0}', space=sflag, size = 0x8, scoped, tag = 'scoped memory for tpu_custom_call.1']
    %8 = vsyncpa [#allocation3], 0
    %s9 = scalar_lea.sflag [#allocation3], 1
    %10 = vsyncpa %s9, 0
    loop: start=0, step=1, limit=6
    $region2: #{tpu_custom_call.1} parent=1 // loop_pre_header
      _
    $region3: #{tpu_custom_call.1} parent=1 // loop_header
      %s12 = sphi 0, %s16
      %p13 = scmp.ge.s32.totalorder %s12, 6
      %s22 = sphi 0, %s24
      %s25 = sphi 0, %s22
      %s26 = sphi 0, %s25
      %s42 = sphi 0, %s26
      %s46 = sphi 0, %s46
      %s48 = sphi 0, %s46
      %s49 = sphi 0, %s48
      %s63 = sphi 0, %s49
      %s67 = sphi 0, %s67
      %s69 = sphi 0, %s67
      %s70 = sphi 0, %s69
      %s84 = sphi 0, %s70
      %s90 = sphi 0, %s92
      %s93 = sphi 0, %s90
      %s94 = sphi 0, %s93
      %s110 = sphi 0, %s94
    $region4: #{tpu_custom_call.1} parent=1 // loop_header_branch
      %15 = sbr.rel (%p13) target = $region8
    $region5: #{tpu_custom_call.1} parent=1 // loop_body
      %s17 = ssub.s32 %s12, 1
      %s18 = ssub.s32 %s12, 2
      %s19 = sadd.s32 %s12, 1
      %s20 = ssub.s32 %s12, %s19
      %p21 = scmp.eq.s32.totalorder %s20, 0
      %s23 = sadd.s32 %s22, 1
      %s24 = scalar_select %p21, %s22, %s23
      %p27 = pneg %p21
      %p28 = scmp.eq.s32.totalorder %s12, 3
      %p29 = por %p27, %p28
      %p30 = scmp.ne.s32.totalorder %s22, %s25
      %p31 = scmp.eq.s32.totalorder %s12, 0
      %p32 = por %p30, %p31
      %p33 = scmp.ne.s32.totalorder %s22, %s25
      %p34 = scmp.eq.s32.totalorder %s17, 3
      %p35 = por %p33, %p34
      %p36 = scmp.ne.s32.totalorder %s25, %s26
      %p37 = scmp.eq.s32.totalorder %s17, 0
      %p38 = por %p36, %p37
      %p39 = scmp.ne.s32.totalorder %s25, %s26
      %p40 = scmp.eq.s32.totalorder %s18, 3
      %p41 = por %p39, %p40
      %p43 = scmp.ne.s32.totalorder %s26, %s42
      %p44 = scmp.eq.s32.totalorder %s18, 0
      %p45 = por %p43, %p44
      %s47 = sadd.s32 %s46, 1
      %p50 = scmp.eq.s32.totalorder %s12, 3
      %p51 = scmp.ne.s32.totalorder %s46, %s48
      %p52 = scmp.eq.s32.totalorder %s12, 0
      %p53 = por %p51, %p52
      %p54 = scmp.ne.s32.totalorder %s46, %s48
      %p55 = scmp.eq.s32.totalorder %s17, 3
      %p56 = por %p54, %p55
      %p57 = scmp.ne.s32.totalorder %s48, %s49
      %p58 = scmp.eq.s32.totalorder %s17, 0
      %p59 = por %p57, %p58
      %p60 = scmp.ne.s32.totalorder %s48, %s49
      %p61 = scmp.eq.s32.totalorder %s18, 3
      %p62 = por %p60, %p61
      %p64 = scmp.ne.s32.totalorder %s49, %s63
      %p65 = scmp.eq.s32.totalorder %s18, 0
      %p66 = por %p64, %p65
      %s68 = sadd.s32 %s67, 1
      %p71 = scmp.eq.s32.totalorder %s12, 3
      %p72 = scmp.ne.s32.totalorder %s67, %s69
      %p73 = scmp.eq.s32.totalorder %s12, 0
      %p74 = por %p72, %p73
      %p75 = scmp.ne.s32.totalorder %s67, %s69
      %p76 = scmp.eq.s32.totalorder %s17, 3
      %p77 = por %p75, %p76
      %p78 = scmp.ne.s32.totalorder %s69, %s70
      %p79 = scmp.eq.s32.totalorder %s17, 0
      %p80 = por %p78, %p79
      %p81 = scmp.ne.s32.totalorder %s69, %s70
      %p82 = scmp.eq.s32.totalorder %s18, 3
      %p83 = por %p81, %p82
      %p85 = scmp.ne.s32.totalorder %s70, %s84
      %p86 = scmp.eq.s32.totalorder %s18, 0
      %p87 = por %p85, %p86
      %s88 = ssub.s32 %s12, %s19
      %p89 = scmp.eq.s32.totalorder %s88, 0
      %s91 = sadd.s32 %s90, 1
      %s92 = scalar_select %p89, %s90, %s91
      %p95 = pneg %p89
      %p96 = scmp.eq.s32.totalorder %s12, 3
      %p97 = por %p95, %p96
      %p98 = scmp.ne.s32.totalorder %s90, %s93
      %p99 = scmp.eq.s32.totalorder %s12, 0
      %p100 = por %p98, %p99
      %p101 = scmp.ne.s32.totalorder %s90, %s93
      %p102 = scmp.eq.s32.totalorder %s17, 3
      %p103 = por %p101, %p102
      %p104 = scmp.ne.s32.totalorder %s93, %s94
      %p105 = scmp.eq.s32.totalorder %s17, 0
      %p106 = por %p104, %p105
      %p107 = scmp.ne.s32.totalorder %s93, %s94
      %p108 = scmp.eq.s32.totalorder %s18, 3
      %p109 = por %p107, %p108
      %p111 = scmp.ne.s32.totalorder %s94, %s110
      %p112 = scmp.eq.s32.totalorder %s18, 0
      %p113 = por %p111, %p112
      %p114 = scmp.le.s32.totalorder 1, %s12
      %p115 = scmp.lt.s32.totalorder %s12, 5
      %p116 = pnand %p114, %p115
      %p117 = pneg %p116
      // Predicated region
      $region9: #{tpu_custom_call.1} parent=5 // pred_check
        _
      $region10: #{tpu_custom_call.1} parent=5 // pred_check_branch
        %119 = sbr.rel (%p116) target = $region12
      $region11: #{tpu_custom_call.1} parent=5 // pred_region
        %s120 = ssub.s32 %s12, 1
        // Predicated region
        $region13: #{tpu_custom_call.1} parent=11 // pred_check
          %p121 = pneg %p59
        $region14: #{tpu_custom_call.1} parent=11 // pred_check_branch
          %123 = sbr.rel (%p121) target = $region16
        $region15: #{tpu_custom_call.1} parent=11 // pred_region
          _
        $region16: #{tpu_custom_call.1} parent=11 // pred_fallthru
          _
        // Predicated region
        $region17: #{tpu_custom_call.1} parent=11 // pred_check
          %p124 = pneg %p80
        $region18: #{tpu_custom_call.1} parent=11 // pred_check_branch
          %126 = sbr.rel (%p124) target = $region20
        $region19: #{tpu_custom_call.1} parent=11 // pred_region
          _
        $region20: #{tpu_custom_call.1} parent=11 // pred_fallthru
          _
      $region12: #{tpu_custom_call.1} parent=5 // pred_fallthru
        _
      %p127 = scmp.lt.s32.totalorder %s12, 4
      // Predicated region
      $region21: #{tpu_custom_call.1} parent=5 // pred_check
        %p128 = pneg %p127
      $region22: #{tpu_custom_call.1} parent=5 // pred_check_branch
        %130 = sbr.rel (%p128) target = $region24
      $region23: #{tpu_custom_call.1} parent=5 // pred_region
        // Predicated region
        $region25: #{tpu_custom_call.1} parent=23 // pred_check
          %p131 = pneg %p32
        $region26: #{tpu_custom_call.1} parent=23 // pred_check_branch
          %133 = sbr.rel (%p131) target = $region28
        $region27: #{tpu_custom_call.1} parent=23 // pred_region
          %s134 = smul.u32 8, %s12
          %p135 = scmp.lt.s32.totalorder %s134, 31
          %s136 = scalar_select %p135, %s134, 31
          %s137 = smul.addr %s136, 3
          %s138 = smul.addr %s137, 8
          %s139 = scalar_lea.vmem %s0, %s138
          %s140 = smul.u32 8, %s12
        $region28: #{tpu_custom_call.1} parent=23 // pred_fallthru
          _
      $region24: #{tpu_custom_call.1} parent=5 // pred_fallthru
        _
      %p141 = scmp.le.s32.totalorder 1, %s12
      %p142 = scmp.lt.s32.totalorder %s12, 5
      %p143 = pnand %p141, %p142
      %p144 = pneg %p143
      // Predicated region
      $region29: #{tpu_custom_call.1} parent=5 // pred_check
        _
      $region30: #{tpu_custom_call.1} parent=5 // pred_check_branch
        %146 = sbr.rel (%p143) target = $region32
      $region31: #{tpu_custom_call.1} parent=5 // pred_region
        %s147 = ssub.s32 %s12, 1
        %s148 = smul.u32 8, %s17
        %p149 = scmp.lt.s32.totalorder %s148, 31
        %s150 = scalar_select %p149, %s148, 31
        %s151 = smul.addr %s150, 3
        %s152 = smul.addr %s151, 8
        %s153 = scalar_lea.vmem %s0, %s152
        %p154 = pneg %p38
        %p155 = pneg %p35
        %p156 = pneg %p59
        %p157 = pneg %p56
        %p158 = pneg %p80
        %p159 = pneg %p77
        %p160 = pneg %p106
        %p161 = pneg %p103
        %s162 = sand.u32 %s93, 1
        %s163 = scalar_lea.sflag [#allocation3], %s162
        %s164 = sand.u32 %s93, 1
        %s165 = smul.addr %s164, 128
        %s166 = scalar_lea.vmem [#allocation2], %s165
        %s167 = smul.u32 8, %s17
        %p168 = scmp.lt.s32.totalorder %s167, 31
        %s169 = scalar_select %p168, %s167, 31
        %s170 = smul.addr %s169, 3
        %s171 = smul.addr %s170, 8
        %s172 = scalar_lea.vmem %s0, %s171
        %s173 = smul.u32 8, %s17
        %s174 = smul.u32 16, %s17
        %v175 = vld [vmem:[%s172] sm:$0xff]
        %v176 = vld [vmem:[%s172 + $0x8] sm:$0xff]
        %v177 = vld [vmem:[%s172 + $0x18] sm:$0xff]
        %v178 = vld [vmem:[%s172 + $0x20] sm:$0xff]
        %v179 = vld [vmem:[%s172 + $0x30] sm:$0xff]
        %v180 = vld [vmem:[%s172 + $0x38] sm:$0xff]
        %v181 = vld [vmem:[%s172 + $0x48] sm:$0xff]
        %v182 = vld [vmem:[%s172 + $0x50] sm:$0xff]
        %v183 = vld [vmem:[%s172 + $0x60] sm:$0xff]
        %v184 = vld [vmem:[%s172 + $0x68] sm:$0xff]
        %v185 = vld [vmem:[%s172 + $0x78] sm:$0xff]
        %v186 = vld [vmem:[%s172 + $0x80] sm:$0xff]
        %v187 = vld [vmem:[%s172 + $0x90] sm:$0xff]
        %v188 = vld [vmem:[%s172 + $0x98] sm:$0xff]
        %v189 = vld [vmem:[%s172 + $0xa8] sm:$0xff]
        %v190 = vld [vmem:[%s172 + $0xb0] sm:$0xff]
        %v191 = vld [vmem:[%s1] sm:$0xf]
        %v192 = vld [vmem:[%s172 + $0x1] sm:$0xff]
        %v193 = vld [vmem:[%s172 + $0x9] sm:$0xff]
        %v194 = vld [vmem:[%s172 + $0x19] sm:$0xff]
        %v195 = vld [vmem:[%s172 + $0x21] sm:$0xff]
        %v196 = vld [vmem:[%s172 + $0x31] sm:$0xff]
        %v197 = vld [vmem:[%s172 + $0x39] sm:$0xff]
        %v198 = vld [vmem:[%s172 + $0x49] sm:$0xff]
        %v199 = vld [vmem:[%s172 + $0x51] sm:$0xff]
        %v200 = vld [vmem:[%s172 + $0x61] sm:$0xff]
        %v201 = vld [vmem:[%s172 + $0x69] sm:$0xff]
        %v202 = vld [vmem:[%s172 + $0x79] sm:$0xff]
        %v203 = vld [vmem:[%s172 + $0x81] sm:$0xff]
        %v204 = vld [vmem:[%s172 + $0x91] sm:$0xff]
        %v205 = vld [vmem:[%s172 + $0x99] sm:$0xff]
        %v206 = vld [vmem:[%s172 + $0xa9] sm:$0xff]
        %v207 = vld [vmem:[%s172 + $0xb1] sm:$0xff]
        %s208 = scalar_lea.vmem %s1, 4
        %v209 = vld [vmem:[%s208] sm:$0xf]
        %vm210 = vcmask 31744
        %v212 = vsel %vm210, %v192, 0
        %v215 = vsel %vm210, %v193, 0
        %v218 = vsel %vm210, %v194, 0
        %v221 = vsel %vm210, %v195, 0
        %v224 = vsel %vm210, %v196, 0
        %v227 = vsel %vm210, %v197, 0
        %v230 = vsel %vm210, %v198, 0
        %v233 = vsel %vm210, %v199, 0
        %v236 = vsel %vm210, %v200, 0
        %v239 = vsel %vm210, %v201, 0
        %v242 = vsel %vm210, %v202, 0
        %v245 = vsel %vm210, %v203, 0
        %v248 = vsel %vm210, %v204, 0
        %v251 = vsel %vm210, %v205, 0
        %v254 = vsel %vm210, %v206, 0
        %v257 = vsel %vm210, %v207, 0
        %vm259 = vcmask 1043456
        %v261 = vsel %vm259, %v209, 0
        %263 = vmatpush.msra.mxu0 0.0
        %264 = vmatpush.msra.mxu0 0.0
        %265 = vmatpush.msra.mxu0 0.0
        %266 = vmatpush.msra.mxu0 0.0
        %267 = vmatpush.msra.mxu0 0.0
        %268 = vmatpush.msra.mxu0 0.0
        %269 = vmatpush.msra.mxu0 0.0
        %270 = vmatpush.msra.mxu0 0.0
        %271 = vmatpush.msra.mxu0 0.0
        %272 = vmatpush.msra.mxu0 0.0
        %273 = vmatpush.msra.mxu0 0.0
        %274 = vmatpush.msra.mxu0 0.0
        %275 = vmatpush.msra.mxu0 0.0
        %276 = vmatpush.msra.mxu0 0.0
        %277 = vmatpush.msra.mxu0 0.0
        %278 = vmatpush.msra.mxu0 %v261
        %279 = vmatmul.f32.gmra.mxu0 %v212
        %v280 = vpop.f32.mrf.mxu0
        %v281 = vadd.f32 0.0, %v280
        %282 = vmatmul.f32.gmra.mxu0 %v215
        %v283 = vpop.f32.mrf.mxu0
        %v284 = vadd.f32 0.0, %v283
        %285 = vmatmul.f32.gmra.mxu0 %v218
        %v286 = vpop.f32.mrf.mxu0
        %v287 = vadd.f32 0.0, %v286
        %288 = vmatmul.f32.gmra.mxu0 %v221
        %v289 = vpop.f32.mrf.mxu0
        %v290 = vadd.f32 0.0, %v289
        %291 = vmatmul.f32.gmra.mxu0 %v224
        %v292 = vpop.f32.mrf.mxu0
        %v293 = vadd.f32 0.0, %v292
        %294 = vmatmul.f32.gmra.mxu0 %v227
        %v295 = vpop.f32.mrf.mxu0
        %v296 = vadd.f32 0.0, %v295
        %297 = vmatmul.f32.gmra.mxu0 %v230
        %v298 = vpop.f32.mrf.mxu0
        %v299 = vadd.f32 0.0, %v298
        %300 = vmatmul.f32.gmra.mxu0 %v233
        %v301 = vpop.f32.mrf.mxu0
        %v302 = vadd.f32 0.0, %v301
        %303 = vmatmul.f32.gmra.mxu0 %v236
        %v304 = vpop.f32.mrf.mxu0
        %v305 = vadd.f32 0.0, %v304
        %306 = vmatmul.f32.gmra.mxu0 %v239
        %v307 = vpop.f32.mrf.mxu0
        %v308 = vadd.f32 0.0, %v307
        %309 = vmatmul.f32.gmra.mxu0 %v242
        %v310 = vpop.f32.mrf.mxu0
        %v311 = vadd.f32 0.0, %v310
        %312 = vmatmul.f32.gmra.mxu0 %v245
        %v313 = vpop.f32.mrf.mxu0
        %v314 = vadd.f32 0.0, %v313
        %315 = vmatmul.f32.gmra.mxu0 %v248
        %v316 = vpop.f32.mrf.mxu0
        %v317 = vadd.f32 0.0, %v316
        %318 = vmatmul.f32.gmra.mxu0 %v251
        %v319 = vpop.f32.mrf.mxu0
        %v320 = vadd.f32 0.0, %v319
        %321 = vmatmul.f32.gmra.mxu0 %v254
        %v322 = vpop.f32.mrf.mxu0
        %v323 = vadd.f32 0.0, %v322
        %324 = vmatmul.f32.gmra.mxu0 %v257
        %v325 = vpop.f32.mrf.mxu0
        %v326 = vadd.f32 0.0, %v325
        %327 = vdwg.mxu0
        %v329 = vsel %vm210, %v175, 0
        %v332 = vsel %vm210, %v176, 0
        %v335 = vsel %vm210, %v177, 0
        %v338 = vsel %vm210, %v178, 0
        %v341 = vsel %vm210, %v179, 0
        %v344 = vsel %vm210, %v180, 0
        %v347 = vsel %vm210, %v181, 0
        %v350 = vsel %vm210, %v182, 0
        %v353 = vsel %vm210, %v183, 0
        %v356 = vsel %vm210, %v184, 0
        %v359 = vsel %vm210, %v185, 0
        %v362 = vsel %vm210, %v186, 0
        %v365 = vsel %vm210, %v187, 0
        %v368 = vsel %vm210, %v188, 0
        %v371 = vsel %vm210, %v189, 0
        %v374 = vsel %vm210, %v190, 0
        %v377 = vsel %vm259, %v191, 0
        %379 = vmatpush.msra.mxu0 0.0
        %380 = vmatpush.msra.mxu0 0.0
        %381 = vmatpush.msra.mxu0 0.0
        %382 = vmatpush.msra.mxu0 0.0
        %383 = vmatpush.msra.mxu0 0.0
        %384 = vmatpush.msra.mxu0 0.0
        %385 = vmatpush.msra.mxu0 0.0
        %386 = vmatpush.msra.mxu0 0.0
        %387 = vmatpush.msra.mxu0 0.0
        %388 = vmatpush.msra.mxu0 0.0
        %389 = vmatpush.msra.mxu0 0.0
        %390 = vmatpush.msra.mxu0 0.0
        %391 = vmatpush.msra.mxu0 0.0
        %392 = vmatpush.msra.mxu0 0.0
        %393 = vmatpush.msra.mxu0 0.0
        %394 = vmatpush.msra.mxu0 %v377
        %395 = vmatmul.f32.gmra.mxu0 %v329
        %v396 = vpop.f32.mrf.mxu0
        %v397 = vadd.f32 %v281, %v396
        %398 = vmatmul.f32.gmra.mxu0 %v332
        %v399 = vpop.f32.mrf.mxu0
        %v400 = vadd.f32 %v284, %v399
        %401 = vmatmul.f32.gmra.mxu0 %v335
        %v402 = vpop.f32.mrf.mxu0
        %v403 = vadd.f32 %v287, %v402
        %404 = vmatmul.f32.gmra.mxu0 %v338
        %v405 = vpop.f32.mrf.mxu0
        %v406 = vadd.f32 %v290, %v405
        %407 = vmatmul.f32.gmra.mxu0 %v341
        %v408 = vpop.f32.mrf.mxu0
        %v409 = vadd.f32 %v293, %v408
        %410 = vmatmul.f32.gmra.mxu0 %v344
        %v411 = vpop.f32.mrf.mxu0
        %v412 = vadd.f32 %v296, %v411
        %413 = vmatmul.f32.gmra.mxu0 %v347
        %v414 = vpop.f32.mrf.mxu0
        %v415 = vadd.f32 %v299, %v414
        %416 = vmatmul.f32.gmra.mxu0 %v350
        %v417 = vpop.f32.mrf.mxu0
        %v418 = vadd.f32 %v302, %v417
        %419 = vmatmul.f32.gmra.mxu0 %v353
        %v420 = vpop.f32.mrf.mxu0
        %v421 = vadd.f32 %v305, %v420
        %422 = vmatmul.f32.gmra.mxu0 %v356
        %v423 = vpop.f32.mrf.mxu0
        %v424 = vadd.f32 %v308, %v423
        %425 = vmatmul.f32.gmra.mxu0 %v359
        %v426 = vpop.f32.mrf.mxu0
        %v427 = vadd.f32 %v311, %v426
        %428 = vmatmul.f32.gmra.mxu0 %v362
        %v429 = vpop.f32.mrf.mxu0
        %v430 = vadd.f32 %v314, %v429
        %431 = vmatmul.f32.gmra.mxu0 %v365
        %v432 = vpop.f32.mrf.mxu0
        %v433 = vadd.f32 %v317, %v432
        %434 = vmatmul.f32.gmra.mxu0 %v368
        %v435 = vpop.f32.mrf.mxu0
        %v436 = vadd.f32 %v320, %v435
        %437 = vmatmul.f32.gmra.mxu0 %v371
        %v438 = vpop.f32.mrf.mxu0
        %v439 = vadd.f32 %v323, %v438
        %440 = vmatmul.f32.gmra.mxu0 %v374
        %v441 = vpop.f32.mrf.mxu0
        %v442 = vadd.f32 %v326, %v441
        %443 = vdwg.mxu0
        %v444 = vld [vmem:[%s172 + $0x2] sm:$0xff]
        %v445 = vld [vmem:[%s172 + $0xa] sm:$0xff]
        %v446 = vld [vmem:[%s172 + $0x1a] sm:$0xff]
        %v447 = vld [vmem:[%s172 + $0x22] sm:$0xff]
        %v448 = vld [vmem:[%s172 + $0x32] sm:$0xff]
        %v449 = vld [vmem:[%s172 + $0x3a] sm:$0xff]
        %v450 = vld [vmem:[%s172 + $0x4a] sm:$0xff]
        %v451 = vld [vmem:[%s172 + $0x52] sm:$0xff]
        %v452 = vld [vmem:[%s172 + $0x62] sm:$0xff]
        %v453 = vld [vmem:[%s172 + $0x6a] sm:$0xff]
        %v454 = vld [vmem:[%s172 + $0x7a] sm:$0xff]
        %v455 = vld [vmem:[%s172 + $0x82] sm:$0xff]
        %v456 = vld [vmem:[%s172 + $0x92] sm:$0xff]
        %v457 = vld [vmem:[%s172 + $0x9a] sm:$0xff]
        %v458 = vld [vmem:[%s172 + $0xaa] sm:$0xff]
        %v459 = vld [vmem:[%s172 + $0xb2] sm:$0xff]
        %s460 = scalar_lea.vmem %s1, 8
        %v461 = vld [vmem:[%s460] sm:$0xf]
        %v463 = vsel %vm210, %v444, 0
        %v466 = vsel %vm210, %v445, 0
        %v469 = vsel %vm210, %v446, 0
        %v472 = vsel %vm210, %v447, 0
        %v475 = vsel %vm210, %v448, 0
        %v478 = vsel %vm210, %v449, 0
        %v481 = vsel %vm210, %v450, 0
        %v484 = vsel %vm210, %v451, 0
        %v487 = vsel %vm210, %v452, 0
        %v490 = vsel %vm210, %v453, 0
        %v493 = vsel %vm210, %v454, 0
        %v496 = vsel %vm210, %v455, 0
        %v499 = vsel %vm210, %v456, 0
        %v502 = vsel %vm210, %v457, 0
        %v505 = vsel %vm210, %v458, 0
        %v508 = vsel %vm210, %v459, 0
        %v511 = vsel %vm259, %v461, 0
        %513 = vmatpush.msra.mxu0 0.0
        %514 = vmatpush.msra.mxu0 0.0
        %515 = vmatpush.msra.mxu0 0.0
        %516 = vmatpush.msra.mxu0 0.0
        %517 = vmatpush.msra.mxu0 0.0
        %518 = vmatpush.msra.mxu0 0.0
        %519 = vmatpush.msra.mxu0 0.0
        %520 = vmatpush.msra.mxu0 0.0
        %521 = vmatpush.msra.mxu0 0.0
        %522 = vmatpush.msra.mxu0 0.0
        %523 = vmatpush.msra.mxu0 0.0
        %524 = vmatpush.msra.mxu0 0.0
        %525 = vmatpush.msra.mxu0 0.0
        %526 = vmatpush.msra.mxu0 0.0
        %527 = vmatpush.msra.mxu0 0.0
        %528 = vmatpush.msra.mxu0 %v511
        %529 = vmatmul.f32.gmra.mxu0 %v463
        %v530 = vpop.f32.mrf.mxu0
        %v531 = vadd.f32 0.0, %v530
        %532 = vmatmul.f32.gmra.mxu0 %v466
        %v533 = vpop.f32.mrf.mxu0
        %v534 = vadd.f32 0.0, %v533
        %535 = vmatmul.f32.gmra.mxu0 %v469
        %v536 = vpop.f32.mrf.mxu0
        %v537 = vadd.f32 0.0, %v536
        %538 = vmatmul.f32.gmra.mxu0 %v472
        %v539 = vpop.f32.mrf.mxu0
        %v540 = vadd.f32 0.0, %v539
        %541 = vmatmul.f32.gmra.mxu0 %v475
        %v542 = vpop.f32.mrf.mxu0
        %v543 = vadd.f32 0.0, %v542
        %544 = vmatmul.f32.gmra.mxu0 %v478
        %v545 = vpop.f32.mrf.mxu0
        %v546 = vadd.f32 0.0, %v545
        %547 = vmatmul.f32.gmra.mxu0 %v481
        %v548 = vpop.f32.mrf.mxu0
        %v549 = vadd.f32 0.0, %v548
        %550 = vmatmul.f32.gmra.mxu0 %v484
        %v551 = vpop.f32.mrf.mxu0
        %v552 = vadd.f32 0.0, %v551
        %553 = vmatmul.f32.gmra.mxu0 %v487
        %v554 = vpop.f32.mrf.mxu0
        %v555 = vadd.f32 0.0, %v554
        %556 = vmatmul.f32.gmra.mxu0 %v490
        %v557 = vpop.f32.mrf.mxu0
        %v558 = vadd.f32 0.0, %v557
        %559 = vmatmul.f32.gmra.mxu0 %v493
        %v560 = vpop.f32.mrf.mxu0
        %v561 = vadd.f32 0.0, %v560
        %562 = vmatmul.f32.gmra.mxu0 %v496
        %v563 = vpop.f32.mrf.mxu0
        %v564 = vadd.f32 0.0, %v563
        %565 = vmatmul.f32.gmra.mxu0 %v499
        %v566 = vpop.f32.mrf.mxu0
        %v567 = vadd.f32 0.0, %v566
        %568 = vmatmul.f32.gmra.mxu0 %v502
        %v569 = vpop.f32.mrf.mxu0
        %v570 = vadd.f32 0.0, %v569
        %571 = vmatmul.f32.gmra.mxu0 %v505
        %v572 = vpop.f32.mrf.mxu0
        %v573 = vadd.f32 0.0, %v572
        %574 = vmatmul.f32.gmra.mxu0 %v508
        %v575 = vpop.f32.mrf.mxu0
        %v576 = vadd.f32 0.0, %v575
        %577 = vdwg.mxu0
        %v578 = vadd.f32 %v397, %v531
        %v579 = vadd.f32 %v400, %v534
        %v580 = vadd.f32 %v403, %v537
        %v581 = vadd.f32 %v406, %v540
        %v582 = vadd.f32 %v409, %v543
        %v583 = vadd.f32 %v412, %v546
        %v584 = vadd.f32 %v415, %v549
        %v585 = vadd.f32 %v418, %v552
        %v586 = vadd.f32 %v421, %v555
        %v587 = vadd.f32 %v424, %v558
        %v588 = vadd.f32 %v427, %v561
        %v589 = vadd.f32 %v430, %v564
        %v590 = vadd.f32 %v433, %v567
        %v591 = vadd.f32 %v436, %v570
        %v592 = vadd.f32 %v439, %v573
        %v593 = vadd.f32 %v442, %v576
        %v594 = vld [vmem:[%s2] sm:$0x1]
        %v596 = vperm.slane %v594, 0
        %v598 = vadd.f32 %v578, %v596
        %v599 = vadd.f32 %v579, %v596
        %v600 = vadd.f32 %v580, %v596
        %v601 = vadd.f32 %v581, %v596
        %v602 = vadd.f32 %v582, %v596
        %v603 = vadd.f32 %v583, %v596
        %v604 = vadd.f32 %v584, %v596
        %v605 = vadd.f32 %v585, %v596
        %v606 = vadd.f32 %v586, %v596
        %v607 = vadd.f32 %v587, %v596
        %v608 = vadd.f32 %v588, %v596
        %v609 = vadd.f32 %v589, %v596
        %v610 = vadd.f32 %v590, %v596
        %v611 = vadd.f32 %v591, %v596
        %v612 = vadd.f32 %v592, %v596
        %v613 = vadd.f32 %v593, %v596
        %614 = vst [vmem:[%s166] sm:$0xff] %v598
        %615 = vst [vmem:[%s166 + $0x8] sm:$0xff] %v599
        %616 = vst [vmem:[%s166 + $0x10] sm:$0xff] %v600
        %617 = vst [vmem:[%s166 + $0x18] sm:$0xff] %v601
        %618 = vst [vmem:[%s166 + $0x20] sm:$0xff] %v602
        %619 = vst [vmem:[%s166 + $0x28] sm:$0xff] %v603
        %620 = vst [vmem:[%s166 + $0x30] sm:$0xff] %v604
        %621 = vst [vmem:[%s166 + $0x38] sm:$0xff] %v605
        %622 = vst [vmem:[%s166 + $0x40] sm:$0xff] %v606
        %623 = vst [vmem:[%s166 + $0x48] sm:$0xff] %v607
        %624 = vst [vmem:[%s166 + $0x50] sm:$0xff] %v608
        %625 = vst [vmem:[%s166 + $0x58] sm:$0xff] %v609
        %626 = vst [vmem:[%s166 + $0x60] sm:$0xff] %v610
        %627 = vst [vmem:[%s166 + $0x68] sm:$0xff] %v611
        %628 = vst [vmem:[%s166 + $0x70] sm:$0xff] %v612
        %629 = vst [vmem:[%s166 + $0x78] sm:$0xff] %v613
        %s630 = sand.u32 %s93, 1
        %s631 = scalar_lea.sflag [#allocation3], %s630
        %s632 = sand.u32 %s93, 1
        %s633 = smul.addr %s632, 128
        %s634 = scalar_lea.vmem [#allocation2], %s633
        // Predicated region
        $region33: #{tpu_custom_call.1} parent=31 // pred_check
          %p635 = pneg %p103
        $region34: #{tpu_custom_call.1} parent=31 // pred_check_branch
          %637 = sbr.rel (%p635) target = $region36
        $region35: #{tpu_custom_call.1} parent=31 // pred_region
          %s638 = smul.u32 16, %s17
          %640 = vsyncadd %s631, 0
          %s641 = smul.addr %s638, 8
          %s642 = scalar_lea.hbm %s3, %s641
          %s643 = sshll.u32 %s634, 4
          %s644 = int_to_ptr.vmem [resolvable:$true] %s643
          %s645 = sshll.u32 %s642, 4
          %s646 = int_to_ptr.hbm [resolvable:$true] %s645
          %651 = dma.vmem_to_hbm [thread:$0]  %s644, 2048, %s646, %s631, 128, 128, 8
        $region36: #{tpu_custom_call.1} parent=31 // pred_fallthru
          _
      $region32: #{tpu_custom_call.1} parent=5 // pred_fallthru
        _
      %p652 = scmp.le.s32.totalorder 2, %s12
      // Predicated region
      $region37: #{tpu_custom_call.1} parent=5 // pred_check
        %p653 = pneg %p652
      $region38: #{tpu_custom_call.1} parent=5 // pred_check_branch
        %655 = sbr.rel (%p653) target = $region40
      $region39: #{tpu_custom_call.1} parent=5 // pred_region
        %s656 = ssub.s32 %s12, 2
        // Predicated region
        $region41: #{tpu_custom_call.1} parent=39 // pred_check
          %p657 = pneg %p109
        $region42: #{tpu_custom_call.1} parent=39 // pred_check_branch
          %659 = sbr.rel (%p657) target = $region44
        $region43: #{tpu_custom_call.1} parent=39 // pred_region
          %s660 = sand.u32 %s94, 1
          %s661 = scalar_lea.sflag [#allocation3], %s660
          %s662 = sand.u32 %s94, 1
          %s663 = smul.addr %s662, 128
          %s664 = scalar_lea.vmem [#allocation2], %s663
          %666 = dma.done %s661, 2048
        $region44: #{tpu_custom_call.1} parent=39 // pred_fallthru
          _
      $region40: #{tpu_custom_call.1} parent=5 // pred_fallthru
        _
    $region6: #{tpu_custom_call.1} parent=1 // loop_footer
      %s16 = sadd.s32 1, %s12
    $region7: #{tpu_custom_call.1} parent=1 // loop_footer_branch
      %11 = sbr.rel target = $region3
    $region8: #{tpu_custom_call.1} parent=1 // loop_exit
      _
    %667 = vsyncpa [#allocation3], 1
    %s668 = scalar_lea.sflag [#allocation3], 1
    %669 = vsyncpa %s668, 1

</llo_original>
